<compile_context>
chip_gen: v6e
topology: v6e:2x2x1
jax: 0.10.0
libtpu: 0.0.40
codegen_flags: <defaults>
</compile_context>

<pallas_src>
import jax
import jax.numpy as jnp
from jax.experimental import pallas as pl
from jax.experimental.pallas import tpu as pltpu

_MIB = 1024 * 1024


def _round_up(n, m):
    return ((n + m - 1) // m) * m


def _round_down(n, m):
    return (n // m) * m


def _pick_vmem_limit_bytes():
    """Chip-adaptive scoped-VMEM limit.

    v5e/v6e: 128 MiB physical VMEM (16/32 MiB scoped default) -> raise to 64 MiB.
    v7x:      64 MiB physical                                 -> stay at 32 MiB.
    Falls back to a safe 32 MiB if the hardware query is unavailable.
    """
    try:
        info = pltpu.get_tpu_info()
        cap = getattr(info, "vmem_capacity_bytes", None)
        if cap is None:
            cap = getattr(info, "vmem_size_bytes", None)
        if cap:
            return int(min(cap // 2, 64 * _MIB))
    except Exception:
        pass
    return 32 * _MIB


def _logreg_kernel_lane_dense(x_ref, w_ref, b_ref, o_ref):
    # x_ref: [TB, D] (VMEM, streamed)   w_ref: [1, D] (VMEM, resident)
    # b_ref: [1]     (SMEM scalar)      o_ref: [1, TB] (lane-dense output tile)
    x = x_ref[...].astype(jnp.float32)
    w = w_ref[...].astype(jnp.float32)           # broadcast [1, D] over rows (VPU)
    row = jnp.sum(x * w, axis=-1)                # XLU lane reduce -> [TB]
    # [TB] -> [1, TB]: one relayout per tile on the otherwise-idle XLU; gives an
    # unmasked, contiguous lane-dense store + output DMA.
    o_ref[...] = (row + b_ref[0])[None, :].astype(o_ref.dtype)


def _logreg_kernel_col(x_ref, w_ref, b_ref, o_ref):
    # Fallback layout for the huge-D regime (tb < 128 rows): o_ref: [TB, 1].
    x = x_ref[...].astype(jnp.float32)
    w = w_ref[...].astype(jnp.float32)
    row = jnp.sum(x * w, axis=-1, keepdims=True)  # [TB, 1]
    o_ref[...] = (row + b_ref[0]).astype(o_ref.dtype)


def logreg_forward(x, w, b, *, target_tile_bytes=None):
    """Forward pass of nn.Linear(input_dim, 1): logit = x @ w.T + b.

    x: [..., D] (f32 or bf16)   w: [1, D] (PyTorch weight layout)   b: [1]
    returns: [..., 1] float32
    """
    D = x.shape[-1]
    assert w.shape == (1, D)
    assert b.shape == (1,)
    lead = x.shape[:-1]
    x2 = x.reshape(-1, D)
    B = x2.shape[0]

    x_item = jnp.dtype(x2.dtype).itemsize
    d_pad = _round_up(D, 128)           # VMEM lane padding of the x / w tiles
    b_pad8 = _round_up(B, 8)            # sublane alignment of the batch tile

    vmem_limit = _pick_vmem_limit_bytes()
    if target_tile_bytes is None:
        # 2-8 MiB per x buffer; double-buffered x + out + weight stays well
        # under ~vmem_limit/2 with padded accounting.
        target_tile_bytes = max(2 * _MIB, min(8 * _MIB, vmem_limit // 8))

    # --- batch-tile rows from the byte budget (padded-footprint accounting) ---
    row_bytes = d_pad * x_item
    tb = max(8, target_tile_bytes // row_bytes)
    tb = _round_down(tb, 128) if tb >= 128 else _round_down(tb, 8)
    tb = max(8, min(tb, b_pad8))        # always a multiple of 8 by construction

    # v7x megacore: keep >= 4 grid steps so both TensorCores stay fed, as long
    # as tiles stay >= 128 rows (keeps the lane-dense out block legal).
    if b_pad8 >= 4 * 128 and pl.cdiv(B, tb) < 4:
        tb = min(tb, _round_up(pl.cdiv(b_pad8, 4), 128))

    grid_len = pl.cdiv(B, tb)
    grid = (grid_len,)

    # Lane-dense output requires the out-block last dim to be a multiple of 128
    # (or equal the full dim when grid_len == 1).
    lane_dense = (grid_len == 1) or (tb % 128 == 0)

    cost = pl.CostEstimate(
        flops=2 * B * D,
        transcendentals=0,
        bytes_accessed=B * D * x_item + D * w.dtype.itemsize + 4 + B * 4,
    )
    cparams = pltpu.CompilerParams(
        dimension_semantics=("parallel",),   # shard batch tiles across TCs (v7x)
        vmem_limit_bytes=vmem_limit,
    )
    in_specs = [
        pl.BlockSpec((tb, D), lambda i: (i, 0)),            # streamed x tiles
        pl.BlockSpec((1, D), lambda i: (0, 0)),             # weight resident in VMEM
        pl.BlockSpec(memory_space=pltpu.MemorySpace.SMEM),  # scalar bias in SMEM
    ]

    if lane_dense:
        out = pl.pallas_call(
            _logreg_kernel_lane_dense,
            out_shape=jax.ShapeDtypeStruct((1, grid_len * tb), jnp.float32),
            grid=grid,
            in_specs=in_specs,
            out_specs=pl.BlockSpec((1, tb), lambda i: (0, i)),
            compiler_params=cparams,
            cost_estimate=cost,
        )(x2, w, b)
        logits = out.reshape(-1)[:B].reshape(B, 1)
    else:
        out = pl.pallas_call(
            _logreg_kernel_col,
            out_shape=jax.ShapeDtypeStruct((B, 1), jnp.float32),
            grid=grid,
            in_specs=in_specs,
            out_specs=pl.BlockSpec((tb, 1), lambda i: (i, 0)),
            compiler_params=cparams,
            cost_estimate=cost,
        )(x2, w, b)
        logits = out

    return logits.reshape(*lead, 1)


if __name__ == "__main__":
    # Small shapes consistent with the module: batch=8, input_dim=32
    batch, input_dim = 8, 32

    key = jax.random.PRNGKey(0)
    kx, kw, kb = jax.random.split(key, 3)

    # Input features
    x = jax.random.normal(kx, (batch, input_dim), dtype=jnp.float32)

    # Deterministic nn.Linear-style init: U(-1/sqrt(D), 1/sqrt(D))
    bound = 1.0 / (input_dim ** 0.5)
    w = jax.random.uniform(kw, (1, input_dim), minval=-bound, maxval=bound,
                           dtype=jnp.float32)   # PyTorch weight shape (1, D)
    b = jax.random.uniform(kb, (1,), minval=-bound, maxval=bound,
                           dtype=jnp.float32)   # PyTorch bias shape (1,)

    logits = logreg_forward(x, w, b)
    logits = jax.block_until_ready(logits)

    # Pure-JAX reference check (matches PyTorch's x @ W.T + b)
    ref = x @ w.T + b
    assert logits.shape == (batch, 1)
    assert jnp.allclose(logits, ref, atol=1e-5, rtol=1e-5)

    # TODO(synk): fit() (Adam/BCE training loop) and predict_proba() (sigmoid +
    # numpy) are host-side training/inference helpers outside forward(); not
    # kernelized.
    print("KERNEL_OK")
</pallas_src>

<mosaic_0001>
module attributes {stable_mosaic.version = 11 : i64} {
  func.func @_logreg_kernel_lane_dense(%arg0: i32, %arg1: memref<8x32xf32, #tpu.memory_space<vmem>>, %arg2: memref<1x32xf32, #tpu.memory_space<vmem>>, %arg3: memref<1xf32, #tpu.memory_space<smem>>, %arg4: memref<1x8xf32, #tpu.memory_space<vmem>>) attributes {dimension_semantics = [#tpu.dimension_semantics<parallel>], iteration_bounds = array<i64: 1>, scalar_prefetch = 0 : i64, scratch_operands = 0 : i64, tpu.core_type = #tpu.core_type<tc>, window_params = [{transform_indices = @transform_0, window_bounds = array<i64: 8, 32>}, {pipeline_mode = #tpu.pipeline_mode<synchronous>, transform_indices = @transform_1, window_bounds = array<i64: 1, 32>}, {transform_indices = @transform_2, window_bounds = array<i64: 1>}, {transform_indices = @transform_3, window_bounds = array<i64: 1, 8>}]} {
    %c0 = arith.constant 0 : index
    %c0_0 = arith.constant 0 : index
    %0 = vector.load %arg1[%c0, %c0_0] : memref<8x32xf32, #tpu.memory_space<vmem>>, vector<8x32xf32>
    %c0_1 = arith.constant 0 : index
    %c0_2 = arith.constant 0 : index
    %1 = vector.load %arg2[%c0_1, %c0_2] : memref<1x32xf32, #tpu.memory_space<vmem>>, vector<1x32xf32>
    %2 = vector.broadcast %1 : vector<1x32xf32> to vector<8x32xf32>
    %3 = arith.mulf %0, %2 : vector<8x32xf32>
    %cst = arith.constant dense<0.000000e+00> : vector<8xf32>
    %4 = vector.multi_reduction <add>, %3, %cst [1] : vector<8x32xf32> to vector<8xf32>
    %c0_3 = arith.constant 0 : index
    %5 = memref.load %arg3[%c0_3] : memref<1xf32, #tpu.memory_space<smem>>
    %6 = vector.broadcast %5 : f32 to vector<8xf32>
    %7 = arith.addf %4, %6 : vector<8xf32>
    %8 = vector.shape_cast %7 : vector<8xf32> to vector<1x8xf32>
    %c0_4 = arith.constant 0 : index
    %c0_5 = arith.constant 0 : index
    %9 = vector.load %arg4[%c0_4, %c0_5] : memref<1x8xf32, #tpu.memory_space<vmem>>, vector<1x8xf32>
    tpu.vector_store %arg4[%c0_4, %c0_5], %8 {strides = array<i32>} : memref<1x8xf32, #tpu.memory_space<vmem>>, vector<1x8xf32>,
    return
  }
  func.func @transform_0(%arg0: i32) -> (i32, i32) {
    %c0_i32 = arith.constant 0 : i32
    %c0_i32_0 = arith.constant 0 : i32
    return %arg0, %c0_i32 : i32, i32
  }
  func.func @transform_1(%arg0: i32) -> (i32, i32) {
    %c0_i32 = arith.constant 0 : i32
    %c0_i32_0 = arith.constant 0 : i32
    %c0_i32_1 = arith.constant 0 : i32
    return %c0_i32, %c0_i32_0 : i32, i32
  }
  func.func @transform_2(%arg0: i32) -> i32 {
    %c0_i32 = arith.constant 0 : i32
    %c0_i32_0 = arith.constant 0 : i32
    return %c0_i32 : i32
  }
  func.func @transform_3(%arg0: i32) -> (i32, i32) {
    %c0_i32 = arith.constant 0 : i32
    %c0_i32_0 = arith.constant 0 : i32
    return %c0_i32, %arg0 : i32, i32
  }
}

</mosaic_0001>

<llo_original>
// kernel: tpu_custom_call.1
$region0: #{tpu_custom_call.1}
  #allocation0 [shape = 'u32[]', space=smem, size = 0x4, offset = 0x4, fixed_abs, tag = 'smem constant byte address 0x4 - core index']
  #allocation1 [shape = 'u32[144,128]{1,0:T(1,128)}', space=vmem, size = 0x12000, scoped, tag = 'internal scratch']
  #allocation2 [shape = 'f32[1]{0:T(128)S(6)}', space=smem, size = 0x200, scoped, tag = 'scoped memory for tpu_custom_call.1']
  %s0 = inlined_call_operand.hbm [shape: f32[8,32], index: 0, kind: input, shape index: {}]
  %s1 = inlined_call_operand.vmem [shape: f32[1,32], index: 1, kind: input, shape index: {}]
  %s2 = inlined_call_operand.<no memory space> [shape: f32[1], index: 2, kind: input, shape index: {}]
  %s3 = inlined_call_operand.hbm [shape: f32[1,8], index: 3, kind: output, shape index: {}]
  %s4 = sld [smem:[#allocation0]]
  $region26: #{tpu_custom_call.1} parent=0
    _
  %s6 = ssub.s32 1, %s4
  %s7 = scalar_select 0, %s6, %s4
  %8 = sst [smem:[#allocation2]] %s2
  $region1: #{tpu_custom_call.1} parent=0
    #allocation3 [shape = 'u8[4096]{0}', space=vmem, size = 0x1000, scoped, tag = 'input window, operand 0, single buffered']
    #allocation4 [shape = 's32[1]{0}', space=sflag, size = 0x4, scoped, tag = 'scoped memory for tpu_custom_call.1']
    #allocation5 [shape = 's32[1]{0}', space=sflag, size = 0x4, scoped, tag = 'scoped memory for tpu_custom_call.1']
    #allocation6 [shape = 'u8[512]{0}', space=vmem, size = 0x400, scoped, tag = 'output window, operand 0, single buffered']
    %9 = vsyncpa [#allocation4], 0
    %10 = vsyncpa [#allocation5], 0
    // Predicated region
    $region2: #{tpu_custom_call.1} parent=1 // pred_check
      _
    $region3: #{tpu_custom_call.1} parent=1 // pred_check_branch
      %12 = sbr.rel (0) target = $region5
    $region4: #{tpu_custom_call.1} parent=1 // pred_region
      %s14 = ssub.s32 128, 128
      %15 = vsyncadd [#allocation4], %s14
      %s17 = sshll.u32 [#allocation3], 4
      %s18 = int_to_ptr.vmem [resolvable:$true] %s17
      %20 = dma.hbm_to_vmem [thread:$0]  %s0, 128, %s18, [#allocation4]
    $region5: #{tpu_custom_call.1} parent=1 // pred_fallthru
      _
    // Predicated region
    $region6: #{tpu_custom_call.1} parent=1 // pred_check
      _
    $region7: #{tpu_custom_call.1} parent=1 // pred_check_branch
      %22 = sbr.rel (0) target = $region9
    $region8: #{tpu_custom_call.1} parent=1 // pred_region
      _
    $region9: #{tpu_custom_call.1} parent=1 // pred_fallthru
      _
    // Predicated region
    $region10: #{tpu_custom_call.1} parent=1 // pred_check
      _
    $region11: #{tpu_custom_call.1} parent=1 // pred_check_branch
      %24 = sbr.rel (0) target = $region13
    $region12: #{tpu_custom_call.1} parent=1 // pred_region
      _
    $region13: #{tpu_custom_call.1} parent=1 // pred_fallthru
      _
    // Predicated region
    $region14: #{tpu_custom_call.1} parent=1 // pred_check
      _
    $region15: #{tpu_custom_call.1} parent=1 // pred_check_branch
      %26 = sbr.rel (0) target = $region17
    $region16: #{tpu_custom_call.1} parent=1 // pred_region
      %27 = dma.done [#allocation4], 128
    $region17: #{tpu_custom_call.1} parent=1 // pred_fallthru
      _
    %v28 = vld [vmem:[#allocation3] sm:$0xff]
    %v29 = vld [vmem:[%s1] sm:$0x1]
    %v31 = vlaneseq
    %v32 = vshrl.u32 %v31, 7
    %v33 = vsub.s32 0, %v32
    %v34 = vrot.slane %v29, %v33
    %v36 = vmul.f32 %v28, %v34
    %vm37 = vcmask 261120
    %v38 = vsel %vm37, %v36, 0.0
    %39 = vadd.xlane.f32.xlu0 %v38
    %v40 = vpop.xlane.xlu0 %39
    %s41 = sld [smem:[#allocation2]]
    %v42 = vstv %s41
    %v43 = vadd.f32 %v40, %v42
    %v45 = vlaneseq
    %v46 = vand.u32 %v45, 127
    %v47 = vlaneseq
    %v48 = vshrl.u32 %v47, 7
    %v49 = vsub.s32 %v46, %v48
    %v50 = vrot.slane %v43, %v49
    %vm52 = vcmask 57344
    %53 = vst.msk [vmem:[#allocation6] sm:$0x1] %vm52, %v50
    // Predicated region
    $region18: #{tpu_custom_call.1} parent=1 // pred_check
      _
    $region19: #{tpu_custom_call.1} parent=1 // pred_check_branch
      %55 = sbr.rel (0) target = $region21
    $region20: #{tpu_custom_call.1} parent=1 // pred_region
      %s57 = ssub.s32 16, 16
      %58 = vsyncadd [#allocation5], %s57
      %s60 = sshll.u32 [#allocation6], 4
      %s61 = int_to_ptr.vmem [resolvable:$true] %s60
      %63 = dma.vmem_to_hbm [thread:$0]  %s61, 16, %s3, [#allocation5]
    $region21: #{tpu_custom_call.1} parent=1 // pred_fallthru
      _
    // Predicated region
    $region22: #{tpu_custom_call.1} parent=1 // pred_check
      _
    $region23: #{tpu_custom_call.1} parent=1 // pred_check_branch
      %65 = sbr.rel (0) target = $region25
    $region24: #{tpu_custom_call.1} parent=1 // pred_region
      %66 = dma.done [#allocation5], 16
    $region25: #{tpu_custom_call.1} parent=1 // pred_fallthru
      _
    %67 = vsyncpa [#allocation4], 1
    %68 = vsyncpa [#allocation5], 1

</llo_original>
